<compile_context>
chip_gen: v7x
topology: tpu7x:2x2x1
jax: 0.10.0
libtpu: 0.0.40
codegen_flags: <defaults>
</compile_context>

<pallas_src>
import jax
import jax.numpy as jnp
from jax.experimental import pallas as pl
from jax.experimental.pallas import tpu as pltpu


def attention_pooling_kernel(x_ref, wT_ref, b_ref, o_ref):
    # x_ref:  (TILE_B, N, D)   activation tile
    # wT_ref: (N*D, N)         projection weight, pre-transposed (resident)
    # b_ref:  (1, N)           projection bias (resident)
    # o_ref:  (TILE_B, D)      pooled output tile
    x = x_ref[...]                                   # (TB, N, D) f32
    tb, n, d = x.shape

    # energy = Linear(inputs.view(B, -1)) -> (TB, N); flatten is an in-VMEM
    # contiguous reshape of the already-loaded block (no extra HBM traffic).
    x_flat = x.reshape(tb, n * d)
    energy = jnp.dot(x_flat, wT_ref[...],
                     preferred_element_type=jnp.float32) + b_ref[...]

    # weights = softmax(energy, dim=1) with max-subtraction; the normalization
    # uses the EUP reciprocal so the VPU divide disappears.
    m = jnp.max(energy, axis=1, keepdims=True)
    e = jnp.exp(energy - m)
    denom = jnp.sum(e, axis=1, keepdims=True)
    weights = e * pl.reciprocal(denom, approx=False)  # exact: keeps 1e-5 tol

    # outputs = (inputs * weights.unsqueeze(-1)).sum(dim=1) -> (TB, D)
    out = jnp.sum(x * weights[:, :, None], axis=1)
    o_ref[...] = out.astype(o_ref.dtype)


def _pick_tile_b(B, max_tile=128):
    """Largest batch tile <= max_tile that divides B, preferring multiples of 8."""
    for t in range(min(B, max_tile), 0, -1):
        if B % t == 0 and (t % 8 == 0 or t == B):
            return t
    return B


def attention_pooling(x, wT, b, *, tile_b=None):
    """x: (B, N, D) f32; wT: (N*D, N) pre-transposed Linear weight; b: (N,) bias."""
    B, N, D = x.shape
    assert wT.shape == (N * D, N)
    assert b.shape == (N,)

    if tile_b is None:
        # Tiny per-tile footprint here; cap at 128 rows (fits comfortably in
        # v7x's 64 MiB VMEM even with double-buffering of the x tile).
        tile_b = _pick_tile_b(B)
    grid = (B // tile_b,)
    b2 = b.reshape(1, N)

    return pl.pallas_call(
        attention_pooling_kernel,
        out_shape=jax.ShapeDtypeStruct((B, D), x.dtype),
        grid=grid,
        in_specs=[
            # activations: tiled over batch
            pl.BlockSpec((tile_b, N, D), lambda i: (i, 0, 0)),
            # weight / bias: constant block index -> stays resident in VMEM
            pl.BlockSpec((N * D, N), lambda i: (0, 0)),
            pl.BlockSpec((1, N), lambda i: (0, 0)),
        ],
        out_specs=pl.BlockSpec((tile_b, D), lambda i: (i, 0)),
        compiler_params=pltpu.CompilerParams(
            dimension_semantics=("parallel",)),  # megacore on v7x; neutral on v5e/v6e
    )(x, wT, b2)


def _reference(x, w, b):
    B, N, D = x.shape
    energy = x.reshape(B, N * D) @ w.T + b            # (B, N)
    weights = jax.nn.softmax(energy, axis=1)
    return jnp.sum(x * weights[:, :, None], axis=1)   # (B, D)


if __name__ == "__main__":
    emb_num = 8    # N
    emb_dim = 32   # D
    batch = 8

    key = jax.random.PRNGKey(0)
    kx, kw, kb = jax.random.split(key, 3)

    x = jax.random.normal(kx, (batch, emb_num, emb_dim), dtype=jnp.float32)
    # nn.Linear(emb_dim*emb_num, emb_num): weight (emb_num, emb_dim*emb_num), bias (emb_num,)
    fan_in = emb_dim * emb_num
    bound = 1.0 / (fan_in ** 0.5)
    w = jax.random.uniform(kw, (emb_num, fan_in), jnp.float32, -bound, bound)
    b = jax.random.uniform(kb, (emb_num,), jnp.float32, -bound, bound)

    # Pre-transpose once at parameter-init time (not per call).
    wT = jnp.asarray(w.T)                             # (N*D, N)

    out = attention_pooling(x, wT, b)
    out = jax.block_until_ready(out)

    ref = _reference(x, w, b)
    assert out.shape == (batch, emb_dim)
    assert jnp.allclose(out, ref, atol=1e-5, rtol=1e-5)

    print("KERNEL_OK")
</pallas_src>

<mosaic_0001>
module attributes {stable_mosaic.version = 11 : i64} {
  func.func @attention_pooling_kernel(%arg0: i32, %arg1: memref<8x8x32xf32, #tpu.memory_space<vmem>>, %arg2: memref<256x8xf32, #tpu.memory_space<vmem>>, %arg3: memref<1x8xf32, #tpu.memory_space<vmem>>, %arg4: memref<8x32xf32, #tpu.memory_space<vmem>>) attributes {dimension_semantics = [#tpu.dimension_semantics<parallel>], iteration_bounds = array<i64: 1>, scalar_prefetch = 0 : i64, scratch_operands = 0 : i64, tpu.core_type = #tpu.core_type<tc>, window_params = [{transform_indices = @transform_0, window_bounds = array<i64: 8, 8, 32>}, {pipeline_mode = #tpu.pipeline_mode<synchronous>, transform_indices = @transform_1, window_bounds = array<i64: 256, 8>}, {pipeline_mode = #tpu.pipeline_mode<synchronous>, transform_indices = @transform_2, window_bounds = array<i64: 1, 8>}, {transform_indices = @transform_3, window_bounds = array<i64: 8, 32>}]} {
    %c0 = arith.constant 0 : index
    %c0_0 = arith.constant 0 : index
    %c0_1 = arith.constant 0 : index
    %0 = vector.load %arg1[%c0, %c0_0, %c0_1] : memref<8x8x32xf32, #tpu.memory_space<vmem>>, vector<8x8x32xf32>
    %1 = vector.shape_cast %0 : vector<8x8x32xf32> to vector<8x256xf32>
    %c0_2 = arith.constant 0 : index
    %c0_3 = arith.constant 0 : index
    %2 = vector.load %arg2[%c0_2, %c0_3] : memref<256x8xf32, #tpu.memory_space<vmem>>, vector<256x8xf32>
    %cst = arith.constant dense<0.000000e+00> : vector<8x8xf32>
    %3 = tpu.matmul %1, %2, %cst {dimension_numbers = #tpu.dot_dimension_numbers<[1], [0], [0], [1], [0, 0, 1, 1], [], []>} : vector<8x256xf32>, vector<256x8xf32>, vector<8x8xf32> -> vector<8x8xf32>
    %c0_4 = arith.constant 0 : index
    %c0_5 = arith.constant 0 : index
    %4 = vector.load %arg3[%c0_4, %c0_5] : memref<1x8xf32, #tpu.memory_space<vmem>>, vector<1x8xf32>
    %5 = vector.broadcast %4 : vector<1x8xf32> to vector<8x8xf32>
    %6 = arith.addf %3, %5 : vector<8x8xf32>
    %cst_6 = arith.constant dense<0xFF800000> : vector<8xf32>
    %7 = vector.multi_reduction <maximumf>, %6, %cst_6 [1] : vector<8x8xf32> to vector<8xf32>
    %8 = vector.shape_cast %7 : vector<8xf32> to vector<8x1xf32>
    %9 = vector.broadcast %8 : vector<8x1xf32> to vector<8x8xf32>
    %10 = arith.subf %6, %9 : vector<8x8xf32>
    %11 = math.exp %10 : vector<8x8xf32>
    %cst_7 = arith.constant dense<0.000000e+00> : vector<8xf32>
    %12 = vector.multi_reduction <add>, %11, %cst_7 [1] : vector<8x8xf32> to vector<8xf32>
    %13 = vector.shape_cast %12 : vector<8xf32> to vector<8x1xf32>
    %14 = tpu.reciprocal %13 : vector<8x1xf32> -> vector<8x1xf32>
    %15 = vector.broadcast %14 : vector<8x1xf32> to vector<8x8xf32>
    %16 = arith.mulf %11, %15 : vector<8x8xf32>
    %17 = vector.shape_cast %16 : vector<8x8xf32> to vector<8x8x1xf32>
    %18 = vector.broadcast %17 : vector<8x8x1xf32> to vector<8x8x32xf32>
    %19 = arith.mulf %0, %18 : vector<8x8x32xf32>
    %cst_8 = arith.constant dense<0.000000e+00> : vector<8x32xf32>
    %20 = vector.multi_reduction <add>, %19, %cst_8 [1] : vector<8x8x32xf32> to vector<8x32xf32>
    %c0_9 = arith.constant 0 : index
    %c0_10 = arith.constant 0 : index
    %21 = vector.load %arg4[%c0_9, %c0_10] : memref<8x32xf32, #tpu.memory_space<vmem>>, vector<8x32xf32>
    tpu.vector_store %arg4[%c0_9, %c0_10], %20 {strides = array<i32>} : memref<8x32xf32, #tpu.memory_space<vmem>>, vector<8x32xf32>,
    return
  }
  func.func @transform_0(%arg0: i32) -> (i32, i32, i32) {
    %c0_i32 = arith.constant 0 : i32
    %c0_i32_0 = arith.constant 0 : i32
    %c0_i32_1 = arith.constant 0 : i32
    return %arg0, %c0_i32, %c0_i32_0 : i32, i32, i32
  }
  func.func @transform_1(%arg0: i32) -> (i32, i32) {
    %c0_i32 = arith.constant 0 : i32
    %c0_i32_0 = arith.constant 0 : i32
    %c0_i32_1 = arith.constant 0 : i32
    return %c0_i32, %c0_i32_0 : i32, i32
  }
  func.func @transform_2(%arg0: i32) -> (i32, i32) {
    %c0_i32 = arith.constant 0 : i32
    %c0_i32_0 = arith.constant 0 : i32
    %c0_i32_1 = arith.constant 0 : i32
    return %c0_i32, %c0_i32_0 : i32, i32
  }
  func.func @transform_3(%arg0: i32) -> (i32, i32) {
    %c0_i32 = arith.constant 0 : i32
    %c0_i32_0 = arith.constant 0 : i32
    return %arg0, %c0_i32 : i32, i32
  }
}

</mosaic_0001>

<llo_original>
// kernel: tpu_custom_call.1
$region0: #{tpu_custom_call.1}
  #allocation0 [shape = 'u32[]', space=smem, size = 0x4, offset = 0x4, fixed_abs, tag = 'smem constant byte address 0x4 - core index']
  #allocation1 [shape = 'u32[144,128]{1,0:T(1,128)}', space=vmem, size = 0x12000, scoped, tag = 'internal scratch']
  %s0 = inlined_call_operand.vmem [shape: f32[8,8,32], index: 0, kind: input, shape index: {}]
  %s1 = inlined_call_operand.vmem [shape: f32[256,8], index: 1, kind: input, shape index: {}]
  %s2 = inlined_call_operand.vmem [shape: f32[1,8], index: 2, kind: input, shape index: {}]
  %s3 = inlined_call_operand.hbm [shape: f32[8,32], index: 3, kind: output, shape index: {}]
  %s4 = sld [smem:[#allocation0]]
  $region22: #{tpu_custom_call.1} parent=0
    _
  %s6 = ssub.s32 1, %s4
  %s7 = scalar_select 0, %s6, %s4
  $region1: #{tpu_custom_call.1} parent=0
    #allocation2 [shape = 'u8[4096]{0}', space=vmem, size = 0x1000, scoped, tag = 'output window, operand 0, single buffered']
    #allocation3 [shape = 's32[1]{0}', space=sflag, size = 0x4, scoped, tag = 'scoped memory for tpu_custom_call.1']
    %8 = vsyncpa [#allocation3], 0
    // Predicated region
    $region2: #{tpu_custom_call.1} parent=1 // pred_check
      _
    $region3: #{tpu_custom_call.1} parent=1 // pred_check_branch
      %10 = sbr.rel (0) target = $region5
    $region4: #{tpu_custom_call.1} parent=1 // pred_region
      _
    $region5: #{tpu_custom_call.1} parent=1 // pred_fallthru
      _
    // Predicated region
    $region6: #{tpu_custom_call.1} parent=1 // pred_check
      _
    $region7: #{tpu_custom_call.1} parent=1 // pred_check_branch
      %12 = sbr.rel (0) target = $region9
    $region8: #{tpu_custom_call.1} parent=1 // pred_region
      _
    $region9: #{tpu_custom_call.1} parent=1 // pred_fallthru
      _
    // Predicated region
    $region10: #{tpu_custom_call.1} parent=1 // pred_check
      _
    $region11: #{tpu_custom_call.1} parent=1 // pred_check_branch
      %14 = sbr.rel (0) target = $region13
    $region12: #{tpu_custom_call.1} parent=1 // pred_region
      _
    $region13: #{tpu_custom_call.1} parent=1 // pred_fallthru
      _
    %v15 = vld [vmem:[%s0] sm:$0xff]
    %v16 = vld [vmem:[%s0 + $0x8] sm:$0xff]
    %v17 = vld [vmem:[%s0 + $0x10] sm:$0xff]
    %v18 = vld [vmem:[%s0 + $0x18] sm:$0xff]
    %v19 = vld [vmem:[%s0 + $0x20] sm:$0xff]
    %v20 = vld [vmem:[%s0 + $0x28] sm:$0xff]
    %v21 = vld [vmem:[%s0 + $0x30] sm:$0xff]
    %v22 = vld [vmem:[%s0 + $0x38] sm:$0xff]
    %v23 = vcombine.low %v15, %v17
    %v24 = vcombine.high %v15, %v17
    %v26 = vunpack.c.l.s4 1983009808
    %v27 = vunpack.c.0.s8 %v26
    %v28 = vlaneseq
    %v29 = vshrl.u32 %v28, 7
    %v30 = vsub.s32 %v27, %v29
    %v31 = vrot.slane %v23, %v30
    %v33 = vunpack.c.l.s4 1983009808
    %v34 = vunpack.c.0.s8 %v33
    %v35 = vlaneseq
    %v36 = vshrl.u32 %v35, 7
    %v37 = vsub.s32 %v34, %v36
    %v38 = vrot.slane %v24, %v37
    %v39 = vcombine.low %v16, %v18
    %v40 = vcombine.high %v16, %v18
    %v42 = vunpack.c.l.s4 1983009808
    %v43 = vunpack.c.0.s8 %v42
    %v44 = vlaneseq
    %v45 = vshrl.u32 %v44, 7
    %v46 = vsub.s32 %v43, %v45
    %v47 = vrot.slane %v39, %v46
    %v49 = vunpack.c.l.s4 1983009808
    %v50 = vunpack.c.0.s8 %v49
    %v51 = vlaneseq
    %v52 = vshrl.u32 %v51, 7
    %v53 = vsub.s32 %v50, %v52
    %v54 = vrot.slane %v40, %v53
    %v55 = vcombine.low %v19, %v21
    %v56 = vcombine.high %v19, %v21
    %v58 = vunpack.c.l.s4 1983009808
    %v59 = vunpack.c.0.s8 %v58
    %v60 = vlaneseq
    %v61 = vshrl.u32 %v60, 7
    %v62 = vsub.s32 %v59, %v61
    %v63 = vrot.slane %v55, %v62
    %v65 = vunpack.c.l.s4 1983009808
    %v66 = vunpack.c.0.s8 %v65
    %v67 = vlaneseq
    %v68 = vshrl.u32 %v67, 7
    %v69 = vsub.s32 %v66, %v68
    %v70 = vrot.slane %v56, %v69
    %v71 = vcombine.low %v20, %v22
    %v72 = vcombine.high %v20, %v22
    %v74 = vunpack.c.l.s4 1983009808
    %v75 = vunpack.c.0.s8 %v74
    %v76 = vlaneseq
    %v77 = vshrl.u32 %v76, 7
    %v78 = vsub.s32 %v75, %v77
    %v79 = vrot.slane %v71, %v78
    %v81 = vunpack.c.l.s4 1983009808
    %v82 = vunpack.c.0.s8 %v81
    %v83 = vlaneseq
    %v84 = vshrl.u32 %v83, 7
    %v85 = vsub.s32 %v82, %v84
    %v86 = vrot.slane %v72, %v85
    %v87 = vcombine.low %v31, %v47
    %v88 = vcombine.high %v31, %v47
    %v90 = vunpack.c.l.s4 1934713408
    %v91 = vunpack.c.0.s8 %v90
    %v92 = vlaneseq
    %v93 = vshrl.u32 %v92, 7
    %v94 = vsub.s32 %v91, %v93
    %v95 = vrot.slane %v87, %v94
    %v97 = vunpack.c.l.s4 1934713408
    %v98 = vunpack.c.0.s8 %v97
    %v99 = vlaneseq
    %v100 = vshrl.u32 %v99, 7
    %v101 = vsub.s32 %v98, %v100
    %v102 = vrot.slane %v88, %v101
    %v103 = vcombine.low %v38, %v54
    %v104 = vcombine.high %v38, %v54
    %v106 = vunpack.c.l.s4 1934713408
    %v107 = vunpack.c.0.s8 %v106
    %v108 = vlaneseq
    %v109 = vshrl.u32 %v108, 7
    %v110 = vsub.s32 %v107, %v109
    %v111 = vrot.slane %v103, %v110
    %v113 = vunpack.c.l.s4 1934713408
    %v114 = vunpack.c.0.s8 %v113
    %v115 = vlaneseq
    %v116 = vshrl.u32 %v115, 7
    %v117 = vsub.s32 %v114, %v116
    %v118 = vrot.slane %v104, %v117
    %v119 = vcombine.low %v63, %v79
    %v120 = vcombine.high %v63, %v79
    %v122 = vunpack.c.l.s4 1934713408
    %v123 = vunpack.c.0.s8 %v122
    %v124 = vlaneseq
    %v125 = vshrl.u32 %v124, 7
    %v126 = vsub.s32 %v123, %v125
    %v127 = vrot.slane %v119, %v126
    %v129 = vunpack.c.l.s4 1934713408
    %v130 = vunpack.c.0.s8 %v129
    %v131 = vlaneseq
    %v132 = vshrl.u32 %v131, 7
    %v133 = vsub.s32 %v130, %v132
    %v134 = vrot.slane %v120, %v133
    %v135 = vcombine.low %v70, %v86
    %v136 = vcombine.high %v70, %v86
    %v138 = vunpack.c.l.s4 1934713408
    %v139 = vunpack.c.0.s8 %v138
    %v140 = vlaneseq
    %v141 = vshrl.u32 %v140, 7
    %v142 = vsub.s32 %v139, %v141
    %v143 = vrot.slane %v135, %v142
    %v145 = vunpack.c.l.s4 1934713408
    %v146 = vunpack.c.0.s8 %v145
    %v147 = vlaneseq
    %v148 = vshrl.u32 %v147, 7
    %v149 = vsub.s32 %v146, %v148
    %v150 = vrot.slane %v136, %v149
    %v151 = vcombine.low %v95, %v127
    %v152 = vcombine.high %v95, %v127
    %v153 = vcombine.low %v102, %v134
    %v154 = vcombine.high %v102, %v134
    %v155 = vcombine.low %v111, %v143
    %v156 = vcombine.high %v111, %v143
    %v157 = vcombine.low %v118, %v150
    %v158 = vcombine.high %v118, %v150
    %160 = vrot.lane.b32.xlu0 %v152, 32
    %v161 = vpop.permute.xlu0 %160
    %164 = vrot.lane.b32.xlu0 %v153, 64
    %v165 = vpop.permute.xlu0 %164
    %168 = vrot.lane.b32.xlu0 %v154, 96
    %v169 = vpop.permute.xlu0 %168
    %172 = vrot.lane.b32.xlu0 %v156, 32
    %v173 = vpop.permute.xlu0 %172
    %176 = vrot.lane.b32.xlu0 %v157, 64
    %v177 = vpop.permute.xlu0 %176
    %180 = vrot.lane.b32.xlu0 %v158, 96
    %v181 = vpop.permute.xlu0 %180
    %vm183 = vcmask 261120
    %v184 = vsel %vm183, %v151, %v161
    %vm185 = vcmask 523264
    %v186 = vsel %vm185, %v184, %v165
    %vm187 = vcmask 785408
    %v188 = vsel %vm187, %v186, %v169
    %v189 = vsel %vm183, %v155, %v173
    %v190 = vsel %vm185, %v189, %v177
    %v191 = vsel %vm187, %v190, %v181
    %v192 = vld [vmem:[%s1] sm:$0xff]
    %v193 = vld [vmem:[%s1 + $0x8] sm:$0xff]
    %v194 = vld [vmem:[%s1 + $0x10] sm:$0xff]
    %v195 = vld [vmem:[%s1 + $0x18] sm:$0xff]
    %v196 = vld [vmem:[%s1 + $0x20] sm:$0xff]
    %v197 = vld [vmem:[%s1 + $0x28] sm:$0xff]
    %v198 = vld [vmem:[%s1 + $0x30] sm:$0xff]
    %v199 = vld [vmem:[%s1 + $0x38] sm:$0xff]
    %v200 = vld [vmem:[%s1 + $0x40] sm:$0xff]
    %v201 = vld [vmem:[%s1 + $0x48] sm:$0xff]
    %v202 = vld [vmem:[%s1 + $0x50] sm:$0xff]
    %v203 = vld [vmem:[%s1 + $0x58] sm:$0xff]
    %v204 = vld [vmem:[%s1 + $0x60] sm:$0xff]
    %v205 = vld [vmem:[%s1 + $0x68] sm:$0xff]
    %v206 = vld [vmem:[%s1 + $0x70] sm:$0xff]
    %v207 = vld [vmem:[%s1 + $0x78] sm:$0xff]
    %v208 = vld [vmem:[%s1 + $0x80] sm:$0xff]
    %v209 = vld [vmem:[%s1 + $0x88] sm:$0xff]
    %v210 = vld [vmem:[%s1 + $0x90] sm:$0xff]
    %v211 = vld [vmem:[%s1 + $0x98] sm:$0xff]
    %v212 = vld [vmem:[%s1 + $0xa0] sm:$0xff]
    %v213 = vld [vmem:[%s1 + $0xa8] sm:$0xff]
    %v214 = vld [vmem:[%s1 + $0xb0] sm:$0xff]
    %v215 = vld [vmem:[%s1 + $0xb8] sm:$0xff]
    %v216 = vld [vmem:[%s1 + $0xc0] sm:$0xff]
    %v217 = vld [vmem:[%s1 + $0xc8] sm:$0xff]
    %v218 = vld [vmem:[%s1 + $0xd0] sm:$0xff]
    %v219 = vld [vmem:[%s1 + $0xd8] sm:$0xff]
    %v220 = vld [vmem:[%s1 + $0xe0] sm:$0xff]
    %v221 = vld [vmem:[%s1 + $0xe8] sm:$0xff]
    %v222 = vld [vmem:[%s1 + $0xf0] sm:$0xff]
    %v223 = vld [vmem:[%s1 + $0xf8] sm:$0xff]
    %v224 = vld [vmem:[%s2] sm:$0x1]
    %v226 = vlaneseq
    %v227 = vshrl.u32 %v226, 7
    %v228 = vsub.s32 0, %v227
    %v229 = vrot.slane %v224, %v228
    %231 = vmatprep.subr.mxu0 0.0
    %232 = vmatpush1.msra.mxu0 %v192
    %233 = vmatprep.subr.mxu0 0.0
    %234 = vmatpush1.msra.mxu0 %v193
    %235 = vmatprep.subr.mxu0 0.0
    %236 = vmatpush1.msra.mxu0 %v194
    %237 = vmatprep.subr.mxu0 0.0
    %238 = vmatpush1.msra.mxu0 %v195
    %239 = vmatprep.subr.mxu0 0.0
    %240 = vmatpush1.msra.mxu0 %v196
    %241 = vmatprep.subr.mxu0 0.0
    %242 = vmatpush1.msra.mxu0 %v197
    %243 = vmatprep.subr.mxu0 0.0
    %244 = vmatpush1.msra.mxu0 %v198
    %245 = vmatprep.subr.mxu0 0.0
    %246 = vmatpush1.msra.mxu0 %v199
    %247 = vmatprep.subr.mxu0 0.0
    %248 = vmatpush1.msra.mxu0 %v200
    %249 = vmatprep.subr.mxu0 0.0
    %250 = vmatpush1.msra.mxu0 %v201
    %251 = vmatprep.subr.mxu0 0.0
    %252 = vmatpush1.msra.mxu0 %v202
    %253 = vmatprep.subr.mxu0 0.0
    %254 = vmatpush1.msra.mxu0 %v203
    %255 = vmatprep.subr.mxu0 0.0
    %256 = vmatpush1.msra.mxu0 %v204
    %257 = vmatprep.subr.mxu0 0.0
    %258 = vmatpush1.msra.mxu0 %v205
    %259 = vmatprep.subr.mxu0 0.0
    %260 = vmatpush1.msra.mxu0 %v206
    %261 = vmatprep.subr.mxu0 0.0
    %262 = vmatpush1.msra.mxu0 %v207
    %263 = vmatprep.subr.mxu0 0.0
    %264 = vmatpush1.msra.mxu0 %v208
    %265 = vmatprep.subr.mxu0 0.0
    %266 = vmatpush1.msra.mxu0 %v209
    %267 = vmatprep.subr.mxu0 0.0
    %268 = vmatpush1.msra.mxu0 %v210
    %269 = vmatprep.subr.mxu0 0.0
    %270 = vmatpush1.msra.mxu0 %v211
    %271 = vmatprep.subr.mxu0 0.0
    %272 = vmatpush1.msra.mxu0 %v212
    %273 = vmatprep.subr.mxu0 0.0
    %274 = vmatpush1.msra.mxu0 %v213
    %275 = vmatprep.subr.mxu0 0.0
    %276 = vmatpush1.msra.mxu0 %v214
    %277 = vmatprep.subr.mxu0 0.0
    %278 = vmatpush1.msra.mxu0 %v215
    %279 = vmatprep.subr.mxu0 0.0
    %280 = vmatpush1.msra.mxu0 %v216
    %281 = vmatprep.subr.mxu0 0.0
    %282 = vmatpush1.msra.mxu0 %v217
    %283 = vmatprep.subr.mxu0 0.0
    %284 = vmatpush1.msra.mxu0 %v218
    %285 = vmatprep.subr.mxu0 0.0
    %286 = vmatpush1.msra.mxu0 %v219
    %287 = vmatprep.subr.mxu0 0.0
    %288 = vmatpush1.msra.mxu0 %v220
    %289 = vmatprep.subr.mxu0 0.0
    %290 = vmatpush1.msra.mxu0 %v221
    %291 = vmatprep.subr.mxu0 0.0
    %292 = vmatpush1.msra.mxu0 %v222
    %293 = vmatprep.subr.mxu0 0.0
    %294 = vmatpush1.msra.mxu0 %v223
    %295 = vmatprep.mubr.f32.mxu0 %v191
    %296 = vmatmul.mubr.f32.gmra.mrb[0].mxu0 %v188
    %v297 = vpop.f32.mrb[0].mxu0
    %v298 = vadd.f32 %v229, %v297
    %v299 = vpop.f32.mrb[0].mxu0
    %300 = vdwg.mxu0
    %vm301 = vcmask 64512
    %v302 = vsel %vm301, %v298, -inf
    %303 = vmax.xlane.f32.xlu0 %v302
    %v304 = vpop.xlane.xlu0 %303
    %v305 = vsub.f32 %v298, %v304
    %v306 = vmul.f32 %v305, 1.442695
    %v307 = vpow.pop %v306
    %v308 = vsel %vm301, %v307, 0.0
    %309 = vadd.xlane.f32.xlu0 %v308
    %v310 = vpop.xlane.xlu0 %309
    %v311 = vrcp.pop %v310
    %v312 = vmul.f32 %v307, %v311
    %v313 = vlaneseq
    %v314 = vshrl.u32 %v313, 7
    %v315 = vsub.s32 0, %v314
    %v316 = vrot.slane %v312, %v315
    %318 = vbcast.lane.b32.xlu0 %v316, 256
    %v319 = vpop.permute.xlu0 %318
    %v320 = vlaneseq
    %v321 = vshrl.u32 %v320, 7
    %v322 = vsub.s32 1, %v321
    %v323 = vrot.slane %v312, %v322
    %325 = vbcast.lane.b32.xlu0 %v323, 256
    %v326 = vpop.permute.xlu0 %325
    %v327 = vlaneseq
    %v328 = vshrl.u32 %v327, 7
    %v329 = vsub.s32 2, %v328
    %v330 = vrot.slane %v312, %v329
    %332 = vbcast.lane.b32.xlu0 %v330, 256
    %v333 = vpop.permute.xlu0 %332
    %v334 = vlaneseq
    %v335 = vshrl.u32 %v334, 7
    %v336 = vsub.s32 3, %v335
    %v337 = vrot.slane %v312, %v336
    %339 = vbcast.lane.b32.xlu0 %v337, 256
    %v340 = vpop.permute.xlu0 %339
    %v341 = vlaneseq
    %v342 = vshrl.u32 %v341, 7
    %v343 = vsub.s32 4, %v342
    %v344 = vrot.slane %v312, %v343
    %346 = vbcast.lane.b32.xlu0 %v344, 256
    %v347 = vpop.permute.xlu0 %346
    %v348 = vlaneseq
    %v349 = vshrl.u32 %v348, 7
    %v350 = vsub.s32 5, %v349
    %v351 = vrot.slane %v312, %v350
    %353 = vbcast.lane.b32.xlu0 %v351, 256
    %v354 = vpop.permute.xlu0 %353
    %v355 = vlaneseq
    %v356 = vshrl.u32 %v355, 7
    %v357 = vsub.s32 6, %v356
    %v358 = vrot.slane %v312, %v357
    %360 = vbcast.lane.b32.xlu0 %v358, 256
    %v361 = vpop.permute.xlu0 %360
    %v362 = vlaneseq
    %v363 = vshrl.u32 %v362, 7
    %v364 = vsub.s32 7, %v363
    %v365 = vrot.slane %v312, %v364
    %367 = vbcast.lane.b32.xlu0 %v365, 256
    %v368 = vpop.permute.xlu0 %367
    %v369 = vmul.f32 %v15, %v319
    %v370 = vmul.f32 %v16, %v326
    %v371 = vmul.f32 %v17, %v333
    %v372 = vmul.f32 %v18, %v340
    %v373 = vmul.f32 %v19, %v347
    %v374 = vmul.f32 %v20, %v354
    %v375 = vmul.f32 %v21, %v361
    %v376 = vmul.f32 %v22, %v368
    %v377 = vsel %vm183, %v369, 0.0
    %v378 = vrot.slane %v377, 4
    %v379 = vadd.f32 %v377, %v378
    %v380 = vrot.slane %v379, 2
    %v381 = vadd.f32 %v379, %v380
    %v382 = vrot.slane %v381, 1
    %v383 = vadd.f32 %v381, %v382
    %v384 = vsel %vm183, %v370, 0.0
    %v385 = vrot.slane %v384, 4
    %v386 = vadd.f32 %v384, %v385
    %v387 = vrot.slane %v386, 2
    %v388 = vadd.f32 %v386, %v387
    %v389 = vrot.slane %v388, 1
    %v390 = vadd.f32 %v388, %v389
    %v391 = vsel %vm183, %v371, 0.0
    %v392 = vrot.slane %v391, 4
    %v393 = vadd.f32 %v391, %v392
    %v394 = vrot.slane %v393, 2
    %v395 = vadd.f32 %v393, %v394
    %v396 = vrot.slane %v395, 1
    %v397 = vadd.f32 %v395, %v396
    %v398 = vsel %vm183, %v372, 0.0
    %v399 = vrot.slane %v398, 4
    %v400 = vadd.f32 %v398, %v399
    %v401 = vrot.slane %v400, 2
    %v402 = vadd.f32 %v400, %v401
    %v403 = vrot.slane %v402, 1
    %v404 = vadd.f32 %v402, %v403
    %v405 = vsel %vm183, %v373, 0.0
    %v406 = vrot.slane %v405, 4
    %v407 = vadd.f32 %v405, %v406
    %v408 = vrot.slane %v407, 2
    %v409 = vadd.f32 %v407, %v408
    %v410 = vrot.slane %v409, 1
    %v411 = vadd.f32 %v409, %v410
    %v412 = vsel %vm183, %v374, 0.0
    %v413 = vrot.slane %v412, 4
    %v414 = vadd.f32 %v412, %v413
    %v415 = vrot.slane %v414, 2
    %v416 = vadd.f32 %v414, %v415
    %v417 = vrot.slane %v416, 1
    %v418 = vadd.f32 %v416, %v417
    %v419 = vsel %vm183, %v375, 0.0
    %v420 = vrot.slane %v419, 4
    %v421 = vadd.f32 %v419, %v420
    %v422 = vrot.slane %v421, 2
    %v423 = vadd.f32 %v421, %v422
    %v424 = vrot.slane %v423, 1
    %v425 = vadd.f32 %v423, %v424
    %v426 = vsel %vm183, %v376, 0.0
    %v427 = vrot.slane %v426, 4
    %v428 = vadd.f32 %v426, %v427
    %v429 = vrot.slane %v428, 2
    %v430 = vadd.f32 %v428, %v429
    %v431 = vrot.slane %v430, 1
    %v432 = vadd.f32 %v430, %v431
    %vm441 = vcmask 1041409
    %v442 = vsel %vm441, %v390, %v383
    %vm443 = vcmask 1042434
    %v444 = vsel %vm443, %v397, %v442
    %vm445 = vcmask 1043459
    %v446 = vsel %vm445, %v404, %v444
    %vm447 = vcmask 1044484
    %v448 = vsel %vm447, %v411, %v446
    %vm449 = vcmask 1045509
    %v450 = vsel %vm449, %v418, %v448
    %vm451 = vcmask 1046534
    %v452 = vsel %vm451, %v425, %v450
    %vm453 = vcmask 1047559
    %v454 = vsel %vm453, %v432, %v452
    %456 = vst.msk [vmem:[#allocation2] sm:$0xff] %vm183, %v454
    // Predicated region
    $region14: #{tpu_custom_call.1} parent=1 // pred_check
      _
    $region15: #{tpu_custom_call.1} parent=1 // pred_check_branch
      %458 = sbr.rel (0) target = $region17
    $region16: #{tpu_custom_call.1} parent=1 // pred_region
      %s460 = ssub.s32 128, 128
      %461 = vsyncadd [#allocation3], %s460
      %s463 = sshll.u32 [#allocation2], 4
      %s464 = int_to_ptr.vmem [resolvable:$true] %s463
      %466 = dma.vmem_to_hbm [thread:$0]  %s464, 128, %s3, [#allocation3]
    $region17: #{tpu_custom_call.1} parent=1 // pred_fallthru
      _
    // Predicated region
    $region18: #{tpu_custom_call.1} parent=1 // pred_check
      _
    $region19: #{tpu_custom_call.1} parent=1 // pred_check_branch
      %468 = sbr.rel (0) target = $region21
    $region20: #{tpu_custom_call.1} parent=1 // pred_region
      %469 = dma.done [#allocation3], 128
    $region21: #{tpu_custom_call.1} parent=1 // pred_fallthru
      _
    %470 = vsyncpa [#allocation3], 1

</llo_original>
